<compile_context>
chip_gen: v6e
topology: v6e:2x2x1
jax: 0.10.0
libtpu: 0.0.40
codegen_flags: <defaults>
</compile_context>

<pallas_src>
import functools

import jax
import jax.numpy as jnp
from jax.experimental import pallas as pl
from jax.experimental.pallas import tpu as pltpu


def _dice_kernel(logit_ref, target_ref, inter_out_ref, denom_out_ref,
                 inter_acc, denom_acc, *, squared: bool):
    k = pl.program_id(1)                       # spatial (reduction) axis

    @pl.when(k == 0)
    def _():
        inter_acc[...] = jnp.zeros_like(inter_acc)
        denom_acc[...] = jnp.zeros_like(denom_acc)

    pred = jax.nn.sigmoid(logit_ref[...].astype(jnp.float32))   # (rb, T)
    tgt = target_ref[...].astype(jnp.float32)                   # (rb, T)

    # Lane-wide elementwise accumulation (VPU only); cross-lane reduce is
    # deferred to the final step so the inner loop has no XLU work and no
    # narrow (rb,1) read-modify-write stores.
    inter_acc[...] += pred * tgt
    if squared:
        denom_acc[...] += pred * pred + tgt * tgt
    else:
        denom_acc[...] += pred + tgt

    @pl.when(k == pl.num_programs(1) - 1)
    def _():
        inter_out_ref[...] = jnp.sum(inter_acc[...], axis=-1, keepdims=True)
        denom_out_ref[...] = jnp.sum(denom_acc[...], axis=-1, keepdims=True)


def soft_binary_dice_2d(logit, target, *, squared=True, smooth=1.0,
                        spatial_tile=None):
    """logit, target: (N, C, H, W) float arrays (f32 or bf16). Returns f32 scalar."""
    assert logit.shape == target.shape, (logit.shape, target.shape)
    N, C, H, W = logit.shape
    R = N * C
    HW = H * W

    # ---- sublane packing: fold spatial elements into rows when R < 8 so every
    # vreg / DMA row is fully used (a (2, T) block wastes 6 of 8 sublanes).
    sub = 1
    if R < 8:
        for s in (8, 4, 2):
            if HW % s == 0:
                sub = s
                break
    Rp = R * sub
    HWp = HW // sub

    logit2d = logit.reshape(Rp, HWp)
    target2d = target.reshape(Rp, HWp)

    # ---- row blocking (leading "parallel" grid axis; sharded across the two
    # TensorCores on v7x, harmless on single-TC chips). Blocks stay multiples
    # of 8 rows to satisfy sublane tiling.
    if Rp >= 16 and Rp % 8 == 0:
        n_row_blocks = 2 if Rp % 16 == 0 else Rp // 8
    else:
        n_row_blocks = 1
    rp_block = Rp // n_row_blocks

    # ---- spatial tile: lane-dense (multiple of 128) divisor of HWp, sized for
    # ~2 MiB of HBM traffic per grid step, capped by a VMEM budget that leaves
    # headroom on v7x (64 MiB VMEM per TensorCore).
    in_bytes = logit2d.dtype.itemsize + target2d.dtype.itemsize
    vmem_per_lane = rp_block * (2 * in_bytes + 2 * 4)   # 2 bufs/input + 2 f32 accs
    vmem_budget = 24 << 20
    if spatial_tile is None:
        if HWp % 128 != 0:
            # TODO(synk): for very large, oddly-shaped images pad HW to a
            # multiple of 1024 (logit pad = -1e9, target pad = 0); here we fall
            # back to a full-width block, which is fine for typical sizes.
            spatial_tile = HWp
        else:
            target_lanes = max(128, (2 << 20) // max(1, rp_block * in_bytes))
            max_lanes = max(128, vmem_budget // max(1, vmem_per_lane))
            lanes = min(target_lanes, max_lanes, HWp)
            nb = HWp // 128                     # number of 128-lane groups
            g = max(1, min(lanes // 128, nb))
            while nb % g != 0:                  # largest divisor of nb <= g
                g -= 1
            spatial_tile = g * 128
    else:
        if HWp % spatial_tile != 0 or not (spatial_tile % 128 == 0
                                           or spatial_tile == HWp):
            raise ValueError(
                f"spatial_tile={spatial_tile} must divide packed width {HWp} "
                f"and be a multiple of 128 (or equal to it)")
    n_tiles = HWp // spatial_tile

    kernel = functools.partial(_dice_kernel, squared=bool(squared))

    inter_p, denom_p = pl.pallas_call(
        kernel,
        out_shape=(jax.ShapeDtypeStruct((Rp, 1), jnp.float32),
                   jax.ShapeDtypeStruct((Rp, 1), jnp.float32)),
        grid_spec=pltpu.PrefetchScalarGridSpec(
            num_scalar_prefetch=0,
            grid=(n_row_blocks, n_tiles),
            in_specs=[
                pl.BlockSpec((rp_block, spatial_tile), lambda i, k: (i, k)),
                pl.BlockSpec((rp_block, spatial_tile), lambda i, k: (i, k)),
            ],
            out_specs=[
                pl.BlockSpec((rp_block, 1), lambda i, k: (i, 0)),
                pl.BlockSpec((rp_block, 1), lambda i, k: (i, 0)),
            ],
            scratch_shapes=[
                pltpu.VMEM((rp_block, spatial_tile), jnp.float32),  # inter acc
                pltpu.VMEM((rp_block, spatial_tile), jnp.float32),  # denom acc
            ],
        ),
        compiler_params=pltpu.CompilerParams(
            dimension_semantics=("parallel", "arbitrary"),
            vmem_limit_bytes=48 * 1024 * 1024,
        ),
    )(logit2d, target2d)

    # O(R) epilogue: undo sublane packing, form per-(N,C) dice, take the mean.
    inter = jnp.sum(inter_p.reshape(R, sub), axis=-1)
    denom = jnp.sum(denom_p.reshape(R, sub), axis=-1)
    loss = 1.0 - (2.0 * inter + smooth) / (denom + smooth)
    return jnp.mean(loss)


def _reference(logit, target, squared=True, smooth=1.0):
    pred = jax.nn.sigmoid(logit.astype(jnp.float32))
    tgt = target.astype(jnp.float32)
    inter = jnp.sum(pred * tgt, axis=(2, 3))
    p = 2 if squared else 1
    denom = jnp.sum(pred ** p, axis=(2, 3)) + jnp.sum(tgt ** p, axis=(2, 3))
    loss = 1.0 - (2.0 * inter + smooth) / (denom + smooth)
    return jnp.mean(loss)


if __name__ == "__main__":
    key = jax.random.PRNGKey(0)

    def make_inputs(key, shape, dtype=jnp.float32):
        k1, k2 = jax.random.split(key)
        logit = jax.random.normal(k1, shape, dtype=dtype)
        target = (jax.random.uniform(k2, shape) > 0.5).astype(dtype)
        return logit, target

    # 1) Primary case matching the module spec (N,1,H,W), squared=True.
    k0, k1, k2 = jax.random.split(key, 3)
    logit, target = make_inputs(k0, (2, 1, 16, 16))
    loss = jax.block_until_ready(
        soft_binary_dice_2d(logit, target, squared=True, smooth=1.0))
    ref = _reference(logit, target, squared=True, smooth=1.0)
    assert jnp.allclose(loss, ref, atol=1e-5, rtol=1e-5), (loss, ref)

    # 2) squared=False branch, multiple row blocks (R=3 -> 3 packed row blocks).
    logit, target = make_inputs(k1, (3, 1, 32, 24))
    loss = jax.block_until_ready(
        soft_binary_dice_2d(logit, target, squared=False, smooth=1.0))
    ref = _reference(logit, target, squared=False, smooth=1.0)
    assert jnp.allclose(loss, ref, atol=1e-5, rtol=1e-5), (loss, ref)

    # 3) Multi-tile spatial reduction (explicit 128-lane tile -> 2 grid steps).
    logit, target = make_inputs(k2, (2, 1, 32, 64))
    loss = jax.block_until_ready(
        soft_binary_dice_2d(logit, target, squared=True, smooth=1.0,
                            spatial_tile=128))
    ref = _reference(logit, target, squared=True, smooth=1.0)
    assert jnp.allclose(loss, ref, atol=1e-5, rtol=1e-5), (loss, ref)

    print("KERNEL_OK")
</pallas_src>

<mosaic_0001>
module attributes {stable_mosaic.version = 11 : i64} {
  func.func @_dice_kernel(%arg0: i32, %arg1: i32, %arg2: memref<8x32xf32, #tpu.memory_space<vmem>>, %arg3: memref<8x32xf32, #tpu.memory_space<vmem>>, %arg4: memref<8x1xf32, #tpu.memory_space<vmem>>, %arg5: memref<8x1xf32, #tpu.memory_space<vmem>>, %arg6: memref<8x32xf32, #tpu.memory_space<vmem>>, %arg7: memref<8x32xf32, #tpu.memory_space<vmem>>) attributes {dimension_semantics = [#tpu.dimension_semantics<parallel>, #tpu.dimension_semantics<arbitrary>], iteration_bounds = array<i64: 2, 1>, scalar_prefetch = 0 : i64, scratch_operands = 2 : i64, tpu.core_type = #tpu.core_type<tc>, window_params = [{transform_indices = @transform_0, window_bounds = array<i64: 8, 32>}, {transform_indices = @transform_1, window_bounds = array<i64: 8, 32>}, {transform_indices = @transform_2, window_bounds = array<i64: 8, 1>}, {transform_indices = @transform_3, window_bounds = array<i64: 8, 1>}]} {
    %c0_i32 = arith.constant 0 : i32
    %0 = arith.cmpi eq, %arg1, %c0_i32 : i32
    %1 = arith.extui %0 : i1 to i32
    %c0_i32_0 = arith.constant 0 : i32
    %2 = arith.cmpi ne, %1, %c0_i32_0 : i32
    scf.if %2 {
      %cst_14 = arith.constant 0.000000e+00 : f32
      %23 = vector.broadcast %cst_14 : f32 to vector<8x32xf32>
      %c0_15 = arith.constant 0 : index
      %c0_16 = arith.constant 0 : index
      %24 = vector.load %arg6[%c0_15, %c0_16] : memref<8x32xf32, #tpu.memory_space<vmem>>, vector<8x32xf32>
      tpu.vector_store %arg6[%c0_15, %c0_16], %23 {strides = array<i32>} : memref<8x32xf32, #tpu.memory_space<vmem>>, vector<8x32xf32>,
      %cst_17 = arith.constant 0.000000e+00 : f32
      %25 = vector.broadcast %cst_17 : f32 to vector<8x32xf32>
      %c0_18 = arith.constant 0 : index
      %c0_19 = arith.constant 0 : index
      %26 = vector.load %arg7[%c0_18, %c0_19] : memref<8x32xf32, #tpu.memory_space<vmem>>, vector<8x32xf32>
      tpu.vector_store %arg7[%c0_18, %c0_19], %25 {strides = array<i32>} : memref<8x32xf32, #tpu.memory_space<vmem>>, vector<8x32xf32>,
    } else {
    }
    %c0 = arith.constant 0 : index
    %c0_1 = arith.constant 0 : index
    %3 = vector.load %arg2[%c0, %c0_1] : memref<8x32xf32, #tpu.memory_space<vmem>>, vector<8x32xf32>
    %4 = arith.negf %3 : vector<8x32xf32>
    %5 = math.exp %4 : vector<8x32xf32>
    %cst = arith.constant 1.000000e+00 : f32
    %6 = vector.broadcast %cst : f32 to vector<8x32xf32>
    %7 = arith.addf %6, %5 : vector<8x32xf32>
    %8 = arith.divf %6, %7 : vector<8x32xf32>
    %c0_2 = arith.constant 0 : index
    %c0_3 = arith.constant 0 : index
    %9 = vector.load %arg3[%c0_2, %c0_3] : memref<8x32xf32, #tpu.memory_space<vmem>>, vector<8x32xf32>
    %c0_4 = arith.constant 0 : index
    %c0_5 = arith.constant 0 : index
    %10 = vector.load %arg6[%c0_4, %c0_5] : memref<8x32xf32, #tpu.memory_space<vmem>>, vector<8x32xf32>
    %11 = arith.mulf %8, %9 : vector<8x32xf32>
    %12 = arith.addf %10, %11 : vector<8x32xf32>
    %c0_6 = arith.constant 0 : index
    %c0_7 = arith.constant 0 : index
    %13 = vector.load %arg6[%c0_6, %c0_7] : memref<8x32xf32, #tpu.memory_space<vmem>>, vector<8x32xf32>
    tpu.vector_store %arg6[%c0_6, %c0_7], %12 {strides = array<i32>} : memref<8x32xf32, #tpu.memory_space<vmem>>, vector<8x32xf32>,
    %c0_8 = arith.constant 0 : index
    %c0_9 = arith.constant 0 : index
    %14 = vector.load %arg7[%c0_8, %c0_9] : memref<8x32xf32, #tpu.memory_space<vmem>>, vector<8x32xf32>
    %15 = arith.mulf %8, %8 : vector<8x32xf32>
    %16 = arith.mulf %9, %9 : vector<8x32xf32>
    %17 = arith.addf %15, %16 : vector<8x32xf32>
    %18 = arith.addf %14, %17 : vector<8x32xf32>
    %c0_10 = arith.constant 0 : index
    %c0_11 = arith.constant 0 : index
    %19 = vector.load %arg7[%c0_10, %c0_11] : memref<8x32xf32, #tpu.memory_space<vmem>>, vector<8x32xf32>
    tpu.vector_store %arg7[%c0_10, %c0_11], %18 {strides = array<i32>} : memref<8x32xf32, #tpu.memory_space<vmem>>, vector<8x32xf32>,
    %c0_i32_12 = arith.constant 0 : i32
    %20 = arith.cmpi eq, %arg1, %c0_i32_12 : i32
    %21 = arith.extui %20 : i1 to i32
    %c0_i32_13 = arith.constant 0 : i32
    %22 = arith.cmpi ne, %21, %c0_i32_13 : i32
    scf.if %22 {
      %c0_14 = arith.constant 0 : index
      %c0_15 = arith.constant 0 : index
      %23 = vector.load %arg6[%c0_14, %c0_15] : memref<8x32xf32, #tpu.memory_space<vmem>>, vector<8x32xf32>
      %cst_16 = arith.constant dense<0.000000e+00> : vector<8xf32>
      %24 = vector.multi_reduction <add>, %23, %cst_16 [1] : vector<8x32xf32> to vector<8xf32>
      %25 = vector.shape_cast %24 : vector<8xf32> to vector<8x1xf32>
      %c0_17 = arith.constant 0 : index
      %c0_18 = arith.constant 0 : index
      %26 = vector.load %arg4[%c0_17, %c0_18] : memref<8x1xf32, #tpu.memory_space<vmem>>, vector<8x1xf32>
      tpu.vector_store %arg4[%c0_17, %c0_18], %25 {strides = array<i32>} : memref<8x1xf32, #tpu.memory_space<vmem>>, vector<8x1xf32>,
      %c0_19 = arith.constant 0 : index
      %c0_20 = arith.constant 0 : index
      %27 = vector.load %arg7[%c0_19, %c0_20] : memref<8x32xf32, #tpu.memory_space<vmem>>, vector<8x32xf32>
      %cst_21 = arith.constant dense<0.000000e+00> : vector<8xf32>
      %28 = vector.multi_reduction <add>, %27, %cst_21 [1] : vector<8x32xf32> to vector<8xf32>
      %29 = vector.shape_cast %28 : vector<8xf32> to vector<8x1xf32>
      %c0_22 = arith.constant 0 : index
      %c0_23 = arith.constant 0 : index
      %30 = vector.load %arg5[%c0_22, %c0_23] : memref<8x1xf32, #tpu.memory_space<vmem>>, vector<8x1xf32>
      tpu.vector_store %arg5[%c0_22, %c0_23], %29 {strides = array<i32>} : memref<8x1xf32, #tpu.memory_space<vmem>>, vector<8x1xf32>,
    } else {
    }
    return
  }
  func.func @transform_0(%arg0: i32, %arg1: i32) -> (i32, i32) {
    %c0_i32 = arith.constant 0 : i32
    return %arg0, %arg1 : i32, i32
  }
  func.func @transform_1(%arg0: i32, %arg1: i32) -> (i32, i32) {
    %c0_i32 = arith.constant 0 : i32
    return %arg0, %arg1 : i32, i32
  }
  func.func @transform_2(%arg0: i32, %arg1: i32) -> (i32, i32) {
    %c0_i32 = arith.constant 0 : i32
    %c0_i32_0 = arith.constant 0 : i32
    return %arg0, %c0_i32 : i32, i32
  }
  func.func @transform_3(%arg0: i32, %arg1: i32) -> (i32, i32) {
    %c0_i32 = arith.constant 0 : i32
    %c0_i32_0 = arith.constant 0 : i32
    return %arg0, %c0_i32 : i32, i32
  }
}

</mosaic_0001>

<llo_original>
// kernel: tpu_custom_call.1
$region0: #{tpu_custom_call.1}
  #allocation0 [shape = 'u32[]', space=smem, size = 0x4, offset = 0x4, fixed_abs, tag = 'smem constant byte address 0x4 - core index']
  #allocation1 [shape = 'u32[144,128]{1,0:T(1,128)}', space=vmem, size = 0x12000, scoped, tag = 'internal scratch']
  #allocation2 [shape = 'f32[8,32]{1,0:T(8,128)}', space=vmem, size = 0x1000, scoped, tag = 'scratch operand']
  #allocation3 [shape = 'f32[8,32]{1,0:T(8,128)}', space=vmem, size = 0x1000, scoped, tag = 'scratch operand']
  %s0 = inlined_call_operand.hbm [shape: f32[16,32], index: 0, kind: input, shape index: {}]
  %s1 = inlined_call_operand.hbm [shape: f32[16,32], index: 1, kind: input, shape index: {}]
  %s2 = inlined_call_operand.vmem [shape: f32[16,1], index: 2, kind: output, shape index: {0}]
  %s3 = inlined_call_operand.vmem [shape: f32[16,1], index: 3, kind: output, shape index: {1}]
  %4 = xla_tuple %s2, %s3
  %s5 = sld [smem:[#allocation0]]
  $region65: #{tpu_custom_call.1} parent=0
    _
  %s7 = ssub.s32 1, %s5
  %s8 = scalar_select 0, %s7, %s5
  $region1: #{tpu_custom_call.1} parent=0
    #allocation4 [shape = 'u8[8192]{0}', space=vmem, size = 0x2000, scoped, tag = 'input window, operand 0']
    #allocation5 [shape = 's32[2]{0}', space=sflag, size = 0x8, scoped, tag = 'scoped memory for tpu_custom_call.1']
    #allocation6 [shape = 'u8[8192]{0}', space=vmem, size = 0x2000, scoped, tag = 'input window, operand 1']
    #allocation7 [shape = 's32[2]{0}', space=sflag, size = 0x8, scoped, tag = 'scoped memory for tpu_custom_call.1']
    %9 = vsyncpa [#allocation5], 0
    %s10 = scalar_lea.sflag [#allocation5], 1
    %11 = vsyncpa %s10, 0
    %12 = vsyncpa [#allocation7], 0
    %s13 = scalar_lea.sflag [#allocation7], 1
    %14 = vsyncpa %s13, 0
    loop: start=0, step=1, limit=4
    $region2: #{tpu_custom_call.1} parent=1 // loop_pre_header
      _
    $region3: #{tpu_custom_call.1} parent=1 // loop_header
      %s16 = sphi 0, %s20
      %p17 = scmp.ge.s32.totalorder %s16, 4
      %s23 = sphi 0, %s35
      %s24 = sphi 0, %s31
      %s25 = sphi 0, %s23
      %s26 = sphi 0, %s24
      %s27 = sphi 0, %s25
      %s28 = sphi 0, %s26
      %s40 = sphi 0, %s42
      %s43 = sphi 0, %s40
      %s44 = sphi 0, %s43
      %s60 = sphi 0, %s44
      %s68 = sphi 0, %s70
      %s71 = sphi 0, %s68
      %s72 = sphi 0, %s71
      %s88 = sphi 0, %s72
      %s94 = sphi 0, %s96
      %s97 = sphi 0, %s94
      %s98 = sphi 0, %s97
      %s114 = sphi 0, %s98
      %s120 = sphi 0, %s122
      %s123 = sphi 0, %s120
      %s124 = sphi 0, %s123
      %s140 = sphi 0, %s124
    $region4: #{tpu_custom_call.1} parent=1 // loop_header_branch
      %19 = sbr.rel (%p17) target = $region8
    $region5: #{tpu_custom_call.1} parent=1 // loop_body
      %s21 = ssub.s32 %s16, 1
      %s22 = ssub.s32 %s16, 2
      %s29 = sadd.s32 1, %s24
      %p30 = scmp.ge.s32.totalorder %s29, 1
      %s31 = scalar_select %p30, 0, %s29
      %s32 = sadd.s32 1, %s23
      %s33 = scalar_select %p30, %s32, %s23
      %p34 = scmp.ge.s32.totalorder %s33, 2
      %s35 = scalar_select %p34, 0, %s33
      %s36 = ssub.s32 %s23, %s35
      %s37 = ssub.s32 %s24, %s31
      %s38 = sor.u32 %s36, %s37
      %p39 = scmp.eq.s32.totalorder %s38, 0
      %s41 = sadd.s32 %s40, 1
      %s42 = scalar_select %p39, %s40, %s41
      %p45 = pneg %p39
      %p46 = scmp.eq.s32.totalorder %s16, 1
      %p47 = por %p45, %p46
      %p48 = scmp.ne.s32.totalorder %s40, %s43
      %p49 = scmp.eq.s32.totalorder %s16, 0
      %p50 = por %p48, %p49
      %p51 = scmp.ne.s32.totalorder %s40, %s43
      %p52 = scmp.eq.s32.totalorder %s21, 1
      %p53 = por %p51, %p52
      %p54 = scmp.ne.s32.totalorder %s43, %s44
      %p55 = scmp.eq.s32.totalorder %s21, 0
      %p56 = por %p54, %p55
      %p57 = scmp.ne.s32.totalorder %s43, %s44
      %p58 = scmp.eq.s32.totalorder %s22, 1
      %p59 = por %p57, %p58
      %p61 = scmp.ne.s32.totalorder %s44, %s60
      %p62 = scmp.eq.s32.totalorder %s22, 0
      %p63 = por %p61, %p62
      %s64 = ssub.s32 %s23, %s35
      %s65 = ssub.s32 %s24, %s31
      %s66 = sor.u32 %s64, %s65
      %p67 = scmp.eq.s32.totalorder %s66, 0
      %s69 = sadd.s32 %s68, 1
      %s70 = scalar_select %p67, %s68, %s69
      %p73 = pneg %p67
      %p74 = scmp.eq.s32.totalorder %s16, 1
      %p75 = por %p73, %p74
      %p76 = scmp.ne.s32.totalorder %s68, %s71
      %p77 = scmp.eq.s32.totalorder %s16, 0
      %p78 = por %p76, %p77
      %p79 = scmp.ne.s32.totalorder %s68, %s71
      %p80 = scmp.eq.s32.totalorder %s21, 1
      %p81 = por %p79, %p80
      %p82 = scmp.ne.s32.totalorder %s71, %s72
      %p83 = scmp.eq.s32.totalorder %s21, 0
      %p84 = por %p82, %p83
      %p85 = scmp.ne.s32.totalorder %s71, %s72
      %p86 = scmp.eq.s32.totalorder %s22, 1
      %p87 = por %p85, %p86
      %p89 = scmp.ne.s32.totalorder %s72, %s88
      %p90 = scmp.eq.s32.totalorder %s22, 0
      %p91 = por %p89, %p90
      %s92 = ssub.s32 %s23, %s35
      %p93 = scmp.eq.s32.totalorder %s92, 0
      %s95 = sadd.s32 %s94, 1
      %s96 = scalar_select %p93, %s94, %s95
      %p99 = pneg %p93
      %p100 = scmp.eq.s32.totalorder %s16, 1
      %p101 = por %p99, %p100
      %p102 = scmp.ne.s32.totalorder %s94, %s97
      %p103 = scmp.eq.s32.totalorder %s16, 0
      %p104 = por %p102, %p103
      %p105 = scmp.ne.s32.totalorder %s94, %s97
      %p106 = scmp.eq.s32.totalorder %s21, 1
      %p107 = por %p105, %p106
      %p108 = scmp.ne.s32.totalorder %s97, %s98
      %p109 = scmp.eq.s32.totalorder %s21, 0
      %p110 = por %p108, %p109
      %p111 = scmp.ne.s32.totalorder %s97, %s98
      %p112 = scmp.eq.s32.totalorder %s22, 1
      %p113 = por %p111, %p112
      %p115 = scmp.ne.s32.totalorder %s98, %s114
      %p116 = scmp.eq.s32.totalorder %s22, 0
      %p117 = por %p115, %p116
      %s118 = ssub.s32 %s23, %s35
      %p119 = scmp.eq.s32.totalorder %s118, 0
      %s121 = sadd.s32 %s120, 1
      %s122 = scalar_select %p119, %s120, %s121
      %p125 = pneg %p119
      %p126 = scmp.eq.s32.totalorder %s16, 1
      %p127 = por %p125, %p126
      %p128 = scmp.ne.s32.totalorder %s120, %s123
      %p129 = scmp.eq.s32.totalorder %s16, 0
      %p130 = por %p128, %p129
      %p131 = scmp.ne.s32.totalorder %s120, %s123
      %p132 = scmp.eq.s32.totalorder %s21, 1
      %p133 = por %p131, %p132
      %p134 = scmp.ne.s32.totalorder %s123, %s124
      %p135 = scmp.eq.s32.totalorder %s21, 0
      %p136 = por %p134, %p135
      %p137 = scmp.ne.s32.totalorder %s123, %s124
      %p138 = scmp.eq.s32.totalorder %s22, 1
      %p139 = por %p137, %p138
      %p141 = scmp.ne.s32.totalorder %s124, %s140
      %p142 = scmp.eq.s32.totalorder %s22, 0
      %p143 = por %p141, %p142
      %p144 = scmp.le.s32.totalorder 1, %s16
      %p145 = scmp.lt.s32.totalorder %s16, 3
      %p146 = pnand %p144, %p145
      %p147 = pneg %p146
      // Predicated region
      $region9: #{tpu_custom_call.1} parent=5 // pred_check
        _
      $region10: #{tpu_custom_call.1} parent=5 // pred_check_branch
        %149 = sbr.rel (%p146) target = $region12
      $region11: #{tpu_custom_call.1} parent=5 // pred_region
        %s150 = ssub.s32 %s16, 1
      $region12: #{tpu_custom_call.1} parent=5 // pred_fallthru
        _
      %p151 = scmp.lt.s32.totalorder %s16, 2
      // Predicated region
      $region13: #{tpu_custom_call.1} parent=5 // pred_check
        %p152 = pneg %p151
      $region14: #{tpu_custom_call.1} parent=5 // pred_check_branch
        %154 = sbr.rel (%p152) target = $region16
      $region15: #{tpu_custom_call.1} parent=5 // pred_region
        // Predicated region
        $region17: #{tpu_custom_call.1} parent=15 // pred_check
          %p155 = pneg %p50
        $region18: #{tpu_custom_call.1} parent=15 // pred_check_branch
          %157 = sbr.rel (%p155) target = $region20
        $region19: #{tpu_custom_call.1} parent=15 // pred_region
          %s158 = sand.u32 %s40, 1
          %s159 = scalar_lea.sflag [#allocation5], %s158
          %s160 = sand.u32 %s40, 1
          %s161 = smul.addr %s160, 8
          %s162 = scalar_lea.vmem [#allocation4], %s161
          %s164 = ssub.s32 128, 128
          %165 = vsyncadd %s159, %s164
          %s166 = sadd.s32 %s24, %s23
          %s167 = smul.addr %s166, 128
          %s168 = scalar_lea.hbm %s0, %s167
          %s170 = sshll.u32 %s162, 4
          %s171 = int_to_ptr.vmem [resolvable:$true] %s170
          %173 = dma.hbm_to_vmem [thread:$0]  %s168, 128, %s171, %s159
        $region20: #{tpu_custom_call.1} parent=15 // pred_fallthru
          _
        // Predicated region
        $region21: #{tpu_custom_call.1} parent=15 // pred_check
          %p174 = pneg %p78
        $region22: #{tpu_custom_call.1} parent=15 // pred_check_branch
          %176 = sbr.rel (%p174) target = $region24
        $region23: #{tpu_custom_call.1} parent=15 // pred_region
          %s177 = sand.u32 %s68, 1
          %s178 = scalar_lea.sflag [#allocation7], %s177
          %s179 = sand.u32 %s68, 1
          %s180 = smul.addr %s179, 8
          %s181 = scalar_lea.vmem [#allocation6], %s180
          %s183 = ssub.s32 128, 128
          %184 = vsyncadd %s178, %s183
          %s185 = sadd.s32 %s24, %s23
          %s186 = smul.addr %s185, 128
          %s187 = scalar_lea.hbm %s1, %s186
          %s189 = sshll.u32 %s181, 4
          %s190 = int_to_ptr.vmem [resolvable:$true] %s189
          %192 = dma.hbm_to_vmem [thread:$0]  %s187, 128, %s190, %s178
        $region24: #{tpu_custom_call.1} parent=15 // pred_fallthru
          _
      $region16: #{tpu_custom_call.1} parent=5 // pred_fallthru
        _
      %p193 = scmp.le.s32.totalorder 1, %s16
      %p194 = scmp.lt.s32.totalorder %s16, 3
      %p195 = pnand %p193, %p194
      %p196 = pneg %p195
      // Predicated region
      $region25: #{tpu_custom_call.1} parent=5 // pred_check
        _
      $region26: #{tpu_custom_call.1} parent=5 // pred_check_branch
        %198 = sbr.rel (%p195) target = $region28
      $region27: #{tpu_custom_call.1} parent=5 // pred_region
        %s199 = ssub.s32 %s16, 1
        %s200 = sand.u32 %s43, 1
        %s201 = scalar_lea.sflag [#allocation5], %s200
        %s202 = sand.u32 %s43, 1
        %s203 = smul.addr %s202, 8
        %s204 = scalar_lea.vmem [#allocation4], %s203
        // Predicated region
        $region29: #{tpu_custom_call.1} parent=27 // pred_check
          %p205 = pneg %p56
        $region30: #{tpu_custom_call.1} parent=27 // pred_check_branch
          %207 = sbr.rel (%p205) target = $region32
        $region31: #{tpu_custom_call.1} parent=27 // pred_region
          %208 = dma.done %s201, 128
        $region32: #{tpu_custom_call.1} parent=27 // pred_fallthru
          _
        %s209 = sand.u32 %s71, 1
        %s210 = scalar_lea.sflag [#allocation7], %s209
        %s211 = sand.u32 %s71, 1
        %s212 = smul.addr %s211, 8
        %s213 = scalar_lea.vmem [#allocation6], %s212
        // Predicated region
        $region33: #{tpu_custom_call.1} parent=27 // pred_check
          %p214 = pneg %p84
        $region34: #{tpu_custom_call.1} parent=27 // pred_check_branch
          %216 = sbr.rel (%p214) target = $region36
        $region35: #{tpu_custom_call.1} parent=27 // pred_region
          %217 = dma.done %s210, 128
        $region36: #{tpu_custom_call.1} parent=27 // pred_fallthru
          _
        %s218 = sand.u32 %s43, 1
        %s219 = scalar_lea.sflag [#allocation5], %s218
        %s220 = sand.u32 %s43, 1
        %s221 = smul.addr %s220, 8
        %s222 = scalar_lea.vmem [#allocation4], %s221
        %p223 = pneg %p56
        %p224 = pneg %p53
        %s225 = sand.u32 %s71, 1
        %s226 = scalar_lea.sflag [#allocation7], %s225
        %s227 = sand.u32 %s71, 1
        %s228 = smul.addr %s227, 8
        %s229 = scalar_lea.vmem [#allocation6], %s228
        %p230 = pneg %p84
        %p231 = pneg %p81
        %p232 = pneg %p110
        %p233 = pneg %p107
        %p234 = scmp.lt.s32.totalorder %s25, 1
        %s235 = scalar_select %p234, %s25, 1
        %s236 = smul.addr %s235, 8
        %s237 = scalar_lea.vmem %s2, %s236
        %p238 = pneg %p136
        %p239 = pneg %p133
        %p240 = scmp.lt.s32.totalorder %s25, 1
        %s241 = scalar_select %p240, %s25, 1
        %s242 = smul.addr %s241, 8
        %s243 = scalar_lea.vmem %s3, %s242
        %p244 = scmp.lt.s32.totalorder %s25, 1
        %s245 = scalar_select %p244, %s25, 1
        %s246 = smul.addr %s245, 8
        %s247 = scalar_lea.vmem %s2, %s246
        %p248 = scmp.lt.s32.totalorder %s25, 1
        %s249 = scalar_select %p248, %s25, 1
        %s250 = smul.addr %s249, 8
        %s251 = scalar_lea.vmem %s3, %s250
        %p252 = scmp.eq.s32.totalorder %s26, 0
        // Predicated region
        $region37: #{tpu_custom_call.1} parent=27 // pred_check
          %p253 = pneg %p252
        $region38: #{tpu_custom_call.1} parent=27 // pred_check_branch
          %255 = sbr.rel (%p253) target = $region40
        $region39: #{tpu_custom_call.1} parent=27 // pred_region
          %vm256 = vcmask 261120
          %257 = vst.msk [vmem:[#allocation2] sm:$0xff] %vm256, 0.0
          %258 = vst.msk [vmem:[#allocation3] sm:$0xff] %vm256, 0.0
        $region40: #{tpu_custom_call.1} parent=27 // pred_fallthru
          _
        %v259 = vld [vmem:[%s204] sm:$0xff]
        %v260 = vxor.u32 %v259, 2147483648
        %v261 = vmul.f32 %v260, 1.442695
        %v262 = vpow.pop %v261
        %v263 = vadd.f32 %v262, 1.0
        %v264 = vrcp.pop %v263
        %v265 = vmul.f32 1.0, %v264
        %v266 = vld [vmem:[%s213] sm:$0xff]
        %v267 = vld [vmem:[#allocation2] sm:$0xff]
        %v268 = vmul.f32 %v265, %v266
        %v269 = vadd.f32 %v267, %v268
        %vm270 = vcmask 261120
        %271 = vst.msk [vmem:[#allocation2] sm:$0xff] %vm270, %v269
        %v272 = vld [vmem:[#allocation3] sm:$0xff]
        %v273 = vmul.f32 %v265, %v265
        %v274 = vmul.f32 %v266, %v266
        %v275 = vadd.f32 %v273, %v274
        %v276 = vadd.f32 %v272, %v275
        %277 = vst.msk [vmem:[#allocation3] sm:$0xff] %vm270, %v276
        // Predicated region
        $region41: #{tpu_custom_call.1} parent=27 // pred_check
          %p278 = pneg %p252
        $region42: #{tpu_custom_call.1} parent=27 // pred_check_branch
          %280 = sbr.rel (%p278) target = $region44
        $region43: #{tpu_custom_call.1} parent=27 // pred_region
          %v281 = vld [vmem:[#allocation2] sm:$0xff]
          %v282 = vsel %vm270, %v281, 0.0
          %283 = vadd.xlane.f32.xlu0 %v282
          %v284 = vpop.xlane.xlu0 %283
          %vm285 = vcmask 7168
          %286 = vst.msk [vmem:[%s247] sm:$0xff] %vm285, %v284
          %v287 = vld [vmem:[#allocation3] sm:$0xff]
          %v288 = vsel %vm270, %v287, 0.0
          %289 = vadd.xlane.f32.xlu0 %v288
          %v290 = vpop.xlane.xlu0 %289
          %291 = vst.msk [vmem:[%s251] sm:$0xff] %vm285, %v290
        $region44: #{tpu_custom_call.1} parent=27 // pred_fallthru
          _
        %p292 = scmp.lt.s32.totalorder %s25, 1
        %s293 = scalar_select %p292, %s25, 1
        %s294 = smul.addr %s293, 8
        %s295 = scalar_lea.vmem %s2, %s294
        %p296 = scmp.lt.s32.totalorder %s25, 1
        %s297 = scalar_select %p296, %s25, 1
        %s298 = smul.addr %s297, 8
        %s299 = scalar_lea.vmem %s3, %s298
        // Predicated region
        $region45: #{tpu_custom_call.1} parent=27 // pred_check
          %p300 = pneg %p107
        $region46: #{tpu_custom_call.1} parent=27 // pred_check_branch
          %302 = sbr.rel (%p300) target = $region48
        $region47: #{tpu_custom_call.1} parent=27 // pred_region
          _
        $region48: #{tpu_custom_call.1} parent=27 // pred_fallthru
          _
        // Predicated region
        $region49: #{tpu_custom_call.1} parent=27 // pred_check
          %p303 = pneg %p133
        $region50: #{tpu_custom_call.1} parent=27 // pred_check_branch
          %305 = sbr.rel (%p303) target = $region52
        $region51: #{tpu_custom_call.1} parent=27 // pred_region
          _
        $region52: #{tpu_custom_call.1} parent=27 // pred_fallthru
          _
      $region28: #{tpu_custom_call.1} parent=5 // pred_fallthru
        _
      %p306 = scmp.le.s32.totalorder 2, %s16
      // Predicated region
      $region53: #{tpu_custom_call.1} parent=5 // pred_check
        %p307 = pneg %p306
      $region54: #{tpu_custom_call.1} parent=5 // pred_check_branch
        %309 = sbr.rel (%p307) target = $region56
      $region55: #{tpu_custom_call.1} parent=5 // pred_region
        %s310 = ssub.s32 %s16, 2
        // Predicated region
        $region57: #{tpu_custom_call.1} parent=55 // pred_check
          %p311 = pneg %p113
        $region58: #{tpu_custom_call.1} parent=55 // pred_check_branch
          %313 = sbr.rel (%p311) target = $region60
        $region59: #{tpu_custom_call.1} parent=55 // pred_region
          %p314 = scmp.lt.s32.totalorder %s27, 1
          %s315 = scalar_select %p314, %s27, 1
          %s316 = smul.addr %s315, 8
          %s317 = scalar_lea.vmem %s2, %s316
        $region60: #{tpu_custom_call.1} parent=55 // pred_fallthru
          _
        // Predicated region
        $region61: #{tpu_custom_call.1} parent=55 // pred_check
          %p318 = pneg %p139
        $region62: #{tpu_custom_call.1} parent=55 // pred_check_branch
          %320 = sbr.rel (%p318) target = $region64
        $region63: #{tpu_custom_call.1} parent=55 // pred_region
          %p321 = scmp.lt.s32.totalorder %s27, 1
          %s322 = scalar_select %p321, %s27, 1
          %s323 = smul.addr %s322, 8
          %s324 = scalar_lea.vmem %s3, %s323
        $region64: #{tpu_custom_call.1} parent=55 // pred_fallthru
          _
      $region56: #{tpu_custom_call.1} parent=5 // pred_fallthru
        _
    $region6: #{tpu_custom_call.1} parent=1 // loop_footer
      %s20 = sadd.s32 1, %s16
    $region7: #{tpu_custom_call.1} parent=1 // loop_footer_branch
      %15 = sbr.rel target = $region3
    $region8: #{tpu_custom_call.1} parent=1 // loop_exit
      _
    %325 = vsyncpa [#allocation5], 1
    %s326 = scalar_lea.sflag [#allocation5], 1
    %327 = vsyncpa %s326, 1
    %328 = vsyncpa [#allocation7], 1
    %s329 = scalar_lea.sflag [#allocation7], 1
    %330 = vsyncpa %s329, 1

</llo_original>
